<compile_context>
chip_gen: v7x
topology: tpu7x:2x2x1
jax: 0.10.0
libtpu: 0.0.40
codegen_flags: <defaults>
</compile_context>

<pallas_src>
import functools

import jax
import jax.numpy as jnp
import numpy as np
from jax.experimental import pallas as pl
from jax.experimental.pallas import tpu as pltpu


def _se_kernel(x_ref, w1t_ref, w2_ref, o_ref, *, inv_hw):
    """Per-sample SE block.

    x_ref  : (1, C, HW)  activations of one batch sample
    w1t_ref: (C, Ch)     fc1 weight, pre-transposed (Ch = C // ratio)
    w2_ref : (C, Ch)     fc2 weight (PyTorch layout)
    o_ref  : (1, C, HW)  gated output
    """
    x = x_ref[0]                                            # (C, HW)

    # Global average pool: lane (minor-axis) reduce.
    y = jnp.sum(x, axis=1, keepdims=True) * inv_hw          # (C, 1)

    # fc1: h[j] = sum_c W1[j, c] * y[c]  -> broadcast-mul + sublane reduce.
    h = jnp.sum(w1t_ref[...] * y, axis=0, keepdims=True)    # (1, Ch)
    h = jnp.maximum(h, 0.0)                                 # ReLU

    # fc2: s[c] = sum_j W2[c, j] * h[j]  -> broadcast-mul + lane reduce.
    s = jnp.sum(w2_ref[...] * h, axis=1, keepdims=True)     # (C, 1)
    s = 1.0 / (1.0 + jnp.exp(-s))                           # sigmoid (EUP)

    # Channel-wise gating: lane-broadcast of the (C, 1) gate over H*W.
    o_ref[0] = (x * s).astype(o_ref.dtype)


def se_block(x_nchw, fc1_w, fc2_w):
    """SE_Block forward.  x:(B,C,H,W), fc1_w:(C//r, C), fc2_w:(C, C//r)."""
    B, C, H, W = x_nchw.shape
    Ch = fc1_w.shape[0]
    HW = H * W

    x2 = x_nchw.reshape(B, C, HW)          # free reshape, no padding copies
    w1t = fc1_w.T                          # (C, Ch), done once in plain JAX

    kernel = functools.partial(_se_kernel, inv_hw=1.0 / HW)
    out = pl.pallas_call(
        kernel,
        out_shape=jax.ShapeDtypeStruct((B, C, HW), x_nchw.dtype),
        grid_spec=pltpu.PrefetchScalarGridSpec(
            num_scalar_prefetch=0,
            grid=(B,),
            in_specs=[
                pl.BlockSpec((1, C, HW), lambda b: (b, 0, 0)),  # per-sample x
                pl.BlockSpec((C, Ch), lambda b: (0, 0)),        # resident W1^T
                pl.BlockSpec((C, Ch), lambda b: (0, 0)),        # resident W2
            ],
            out_specs=pl.BlockSpec((1, C, HW), lambda b: (b, 0, 0)),
        ),
        compiler_params=pltpu.CompilerParams(
            dimension_semantics=("parallel",)),  # one sample per TensorCore
    )(x2, w1t, fc2_w)
    return out.reshape(B, C, H, W)


def reference_forward(x, fc1_w, fc2_w):
    """Pure-JAX reference matching the PyTorch SE_Block."""
    y = jnp.mean(x, axis=(2, 3))                  # (B, C) global avg pool
    h = jax.nn.relu(y @ fc1_w.T)                  # (B, C//r)
    s = jax.nn.sigmoid(h @ fc2_w.T)               # (B, C)
    return x * s[:, :, None, None]


if __name__ == "__main__":
    key = jax.random.PRNGKey(0)
    kx, k1, k2 = jax.random.split(key, 3)

    B, C, H, W = 2, 64, 16, 16
    ratio = 16
    Ch = C // ratio

    x = jax.random.normal(kx, (B, C, H, W), jnp.float32)
    # PyTorch nn.Linear(C, C//r, bias=False) / nn.Linear(C//r, C, bias=False)
    b1 = 1.0 / np.sqrt(C)
    b2 = 1.0 / np.sqrt(Ch)
    fc1_w = jax.random.uniform(k1, (Ch, C), jnp.float32, -b1, b1)
    fc2_w = jax.random.uniform(k2, (C, Ch), jnp.float32, -b2, b2)

    fwd = jax.jit(se_block)
    y_out = jax.block_until_ready(fwd(x, fc1_w, fc2_w))
    assert y_out.shape == (B, C, H, W), y_out.shape

    y_ref = reference_forward(x, fc1_w, fc2_w)
    np.testing.assert_allclose(np.asarray(y_out), np.asarray(y_ref),
                               rtol=1e-4, atol=1e-5)
    print("KERNEL_OK")
</pallas_src>

<mosaic_0001>
module attributes {stable_mosaic.version = 11 : i64} {
  func.func @_se_kernel(%arg0: i32, %arg1: memref<1x64x256xf32, #tpu.memory_space<vmem>>, %arg2: memref<64x4xf32, #tpu.memory_space<vmem>>, %arg3: memref<64x4xf32, #tpu.memory_space<vmem>>, %arg4: memref<1x64x256xf32, #tpu.memory_space<vmem>>) attributes {dimension_semantics = [#tpu.dimension_semantics<parallel>], iteration_bounds = array<i64: 2>, scalar_prefetch = 0 : i64, scratch_operands = 0 : i64, tpu.core_type = #tpu.core_type<tc>, window_params = [{transform_indices = @transform_0, window_bounds = array<i64: 1, 64, 256>}, {pipeline_mode = #tpu.pipeline_mode<synchronous>, transform_indices = @transform_1, window_bounds = array<i64: 64, 4>}, {pipeline_mode = #tpu.pipeline_mode<synchronous>, transform_indices = @transform_2, window_bounds = array<i64: 64, 4>}, {transform_indices = @transform_3, window_bounds = array<i64: 1, 64, 256>}]} {
    %c0 = arith.constant 0 : index
    %c0_0 = arith.constant 0 : index
    %c0_1 = arith.constant 0 : index
    %0 = vector.load %arg1[%c0, %c0_0, %c0_1] : memref<1x64x256xf32, #tpu.memory_space<vmem>>, vector<1x64x256xf32>
    %1 = vector.shape_cast %0 : vector<1x64x256xf32> to vector<64x256xf32>
    %cst = arith.constant dense<0.000000e+00> : vector<64xf32>
    %2 = vector.multi_reduction <add>, %1, %cst [1] : vector<64x256xf32> to vector<64xf32>
    %3 = vector.shape_cast %2 : vector<64xf32> to vector<64x1xf32>
    %cst_2 = arith.constant 3.906250e-03 : f32
    %4 = vector.broadcast %cst_2 : f32 to vector<64x1xf32>
    %5 = arith.mulf %3, %4 : vector<64x1xf32>
    %c0_3 = arith.constant 0 : index
    %c0_4 = arith.constant 0 : index
    %6 = vector.load %arg2[%c0_3, %c0_4] : memref<64x4xf32, #tpu.memory_space<vmem>>, vector<64x4xf32>
    %7 = vector.broadcast %5 : vector<64x1xf32> to vector<64x4xf32>
    %8 = arith.mulf %6, %7 : vector<64x4xf32>
    %cst_5 = arith.constant dense<0.000000e+00> : vector<4xf32>
    %9 = vector.multi_reduction <add>, %8, %cst_5 [0] : vector<64x4xf32> to vector<4xf32>
    %10 = vector.shape_cast %9 : vector<4xf32> to vector<1x4xf32>
    %cst_6 = arith.constant 0.000000e+00 : f32
    %11 = vector.broadcast %cst_6 : f32 to vector<1x4xf32>
    %12 = arith.maximumf %10, %11 : vector<1x4xf32>
    %c0_7 = arith.constant 0 : index
    %c0_8 = arith.constant 0 : index
    %13 = vector.load %arg3[%c0_7, %c0_8] : memref<64x4xf32, #tpu.memory_space<vmem>>, vector<64x4xf32>
    %14 = vector.broadcast %12 : vector<1x4xf32> to vector<64x4xf32>
    %15 = arith.mulf %13, %14 : vector<64x4xf32>
    %cst_9 = arith.constant dense<0.000000e+00> : vector<64xf32>
    %16 = vector.multi_reduction <add>, %15, %cst_9 [1] : vector<64x4xf32> to vector<64xf32>
    %17 = vector.shape_cast %16 : vector<64xf32> to vector<64x1xf32>
    %cst_10 = arith.constant 0.000000e+00 : f32
    %18 = vector.broadcast %cst_10 : f32 to vector<64x1xf32>
    %19 = arith.subf %18, %17 : vector<64x1xf32>
    %20 = math.exp %19 : vector<64x1xf32>
    %cst_11 = arith.constant 1.000000e+00 : f32
    %21 = vector.broadcast %cst_11 : f32 to vector<64x1xf32>
    %22 = arith.addf %21, %20 : vector<64x1xf32>
    %cst_12 = arith.constant 1.000000e+00 : f32
    %23 = vector.broadcast %cst_12 : f32 to vector<64x1xf32>
    %24 = arith.divf %23, %22 : vector<64x1xf32>
    %25 = vector.broadcast %24 : vector<64x1xf32> to vector<64x256xf32>
    %26 = arith.mulf %1, %25 : vector<64x256xf32>
    %c0_13 = arith.constant 0 : index
    %c0_14 = arith.constant 0 : index
    %c0_15 = arith.constant 0 : index
    %27 = vector.load %arg4[%c0_13, %c0_14, %c0_15] : memref<1x64x256xf32, #tpu.memory_space<vmem>>, vector<1x64x256xf32>
    %28 = vector.shape_cast %27 : vector<1x64x256xf32> to vector<64x256xf32>
    %29 = vector.shape_cast %26 : vector<64x256xf32> to vector<1x64x256xf32>
    tpu.vector_store %arg4[%c0_13, %c0_14, %c0_15], %29 {strides = array<i32>} : memref<1x64x256xf32, #tpu.memory_space<vmem>>, vector<1x64x256xf32>,
    return
  }
  func.func @transform_0(%arg0: i32) -> (i32, i32, i32) {
    %c0_i32 = arith.constant 0 : i32
    %c0_i32_0 = arith.constant 0 : i32
    %c0_i32_1 = arith.constant 0 : i32
    return %arg0, %c0_i32, %c0_i32_0 : i32, i32, i32
  }
  func.func @transform_1(%arg0: i32) -> (i32, i32) {
    %c0_i32 = arith.constant 0 : i32
    %c0_i32_0 = arith.constant 0 : i32
    %c0_i32_1 = arith.constant 0 : i32
    return %c0_i32, %c0_i32_0 : i32, i32
  }
  func.func @transform_2(%arg0: i32) -> (i32, i32) {
    %c0_i32 = arith.constant 0 : i32
    %c0_i32_0 = arith.constant 0 : i32
    %c0_i32_1 = arith.constant 0 : i32
    return %c0_i32, %c0_i32_0 : i32, i32
  }
  func.func @transform_3(%arg0: i32) -> (i32, i32, i32) {
    %c0_i32 = arith.constant 0 : i32
    %c0_i32_0 = arith.constant 0 : i32
    %c0_i32_1 = arith.constant 0 : i32
    return %arg0, %c0_i32, %c0_i32_0 : i32, i32, i32
  }
}

</mosaic_0001>

<llo_original>
// kernel: se_block.1
$region0: #{se_block.1}
  #allocation0 [shape = 'u32[]', space=smem, size = 0x4, offset = 0x4, fixed_abs, tag = 'smem constant byte address 0x4 - core index']
  #allocation1 [shape = 'u32[144,128]{1,0:T(1,128)}', space=vmem, size = 0x12000, scoped, tag = 'internal scratch']
  %s0 = inlined_call_operand.vmem [shape: f32[2,64,256], index: 0, kind: input, shape index: {}]
  %s1 = inlined_call_operand.vmem [shape: f32[64,4], index: 1, kind: input, shape index: {}]
  %s2 = inlined_call_operand.vmem [shape: f32[64,4], index: 2, kind: input, shape index: {}]
  %s3 = inlined_call_operand.vmem [shape: f32[2,64,256], index: 3, kind: output, shape index: {}]
  %s4 = sld [smem:[#allocation0]]
  $region45: #{se_block.1} parent=0
    _
  %s6 = ssub.s32 1, %s4
  %s7 = scalar_select 0, %s6, %s4
  loop: start=0, step=1, limit=4
  $region2: #{se_block.1} parent=0 // loop_pre_header
    _
  $region3: #{se_block.1} parent=0 // loop_header
    %s9 = sphi 0, %s13
    %p10 = scmp.ge.s32.totalorder %s9, 4
    %s19 = sphi 0, %s21
    %s22 = sphi 0, %s19
    %s23 = sphi 0, %s22
    %s39 = sphi 0, %s23
    %s43 = sphi 0, %s43
    %s45 = sphi 0, %s43
    %s46 = sphi 0, %s45
    %s60 = sphi 0, %s46
    %s64 = sphi 0, %s64
    %s66 = sphi 0, %s64
    %s67 = sphi 0, %s66
    %s81 = sphi 0, %s67
    %s87 = sphi 0, %s89
    %s90 = sphi 0, %s87
    %s91 = sphi 0, %s90
    %s107 = sphi 0, %s91
  $region4: #{se_block.1} parent=0 // loop_header_branch
    %12 = sbr.rel (%p10) target = $region8
  $region5: #{se_block.1} parent=0 // loop_body
    %s14 = ssub.s32 %s9, 1
    %s15 = ssub.s32 %s9, 2
    %s16 = sadd.s32 %s9, 1
    %s17 = ssub.s32 %s9, %s16
    %p18 = scmp.eq.s32.totalorder %s17, 0
    %s20 = sadd.s32 %s19, 1
    %s21 = scalar_select %p18, %s19, %s20
    %p24 = pneg %p18
    %p25 = scmp.eq.s32.totalorder %s9, 1
    %p26 = por %p24, %p25
    %p27 = scmp.ne.s32.totalorder %s19, %s22
    %p28 = scmp.eq.s32.totalorder %s9, 0
    %p29 = por %p27, %p28
    %p30 = scmp.ne.s32.totalorder %s19, %s22
    %p31 = scmp.eq.s32.totalorder %s14, 1
    %p32 = por %p30, %p31
    %p33 = scmp.ne.s32.totalorder %s22, %s23
    %p34 = scmp.eq.s32.totalorder %s14, 0
    %p35 = por %p33, %p34
    %p36 = scmp.ne.s32.totalorder %s22, %s23
    %p37 = scmp.eq.s32.totalorder %s15, 1
    %p38 = por %p36, %p37
    %p40 = scmp.ne.s32.totalorder %s23, %s39
    %p41 = scmp.eq.s32.totalorder %s15, 0
    %p42 = por %p40, %p41
    %s44 = sadd.s32 %s43, 1
    %p47 = scmp.eq.s32.totalorder %s9, 1
    %p48 = scmp.ne.s32.totalorder %s43, %s45
    %p49 = scmp.eq.s32.totalorder %s9, 0
    %p50 = por %p48, %p49
    %p51 = scmp.ne.s32.totalorder %s43, %s45
    %p52 = scmp.eq.s32.totalorder %s14, 1
    %p53 = por %p51, %p52
    %p54 = scmp.ne.s32.totalorder %s45, %s46
    %p55 = scmp.eq.s32.totalorder %s14, 0
    %p56 = por %p54, %p55
    %p57 = scmp.ne.s32.totalorder %s45, %s46
    %p58 = scmp.eq.s32.totalorder %s15, 1
    %p59 = por %p57, %p58
    %p61 = scmp.ne.s32.totalorder %s46, %s60
    %p62 = scmp.eq.s32.totalorder %s15, 0
    %p63 = por %p61, %p62
    %s65 = sadd.s32 %s64, 1
    %p68 = scmp.eq.s32.totalorder %s9, 1
    %p69 = scmp.ne.s32.totalorder %s64, %s66
    %p70 = scmp.eq.s32.totalorder %s9, 0
    %p71 = por %p69, %p70
    %p72 = scmp.ne.s32.totalorder %s64, %s66
    %p73 = scmp.eq.s32.totalorder %s14, 1
    %p74 = por %p72, %p73
    %p75 = scmp.ne.s32.totalorder %s66, %s67
    %p76 = scmp.eq.s32.totalorder %s14, 0
    %p77 = por %p75, %p76
    %p78 = scmp.ne.s32.totalorder %s66, %s67
    %p79 = scmp.eq.s32.totalorder %s15, 1
    %p80 = por %p78, %p79
    %p82 = scmp.ne.s32.totalorder %s67, %s81
    %p83 = scmp.eq.s32.totalorder %s15, 0
    %p84 = por %p82, %p83
    %s85 = ssub.s32 %s9, %s16
    %p86 = scmp.eq.s32.totalorder %s85, 0
    %s88 = sadd.s32 %s87, 1
    %s89 = scalar_select %p86, %s87, %s88
    %p92 = pneg %p86
    %p93 = scmp.eq.s32.totalorder %s9, 1
    %p94 = por %p92, %p93
    %p95 = scmp.ne.s32.totalorder %s87, %s90
    %p96 = scmp.eq.s32.totalorder %s9, 0
    %p97 = por %p95, %p96
    %p98 = scmp.ne.s32.totalorder %s87, %s90
    %p99 = scmp.eq.s32.totalorder %s14, 1
    %p100 = por %p98, %p99
    %p101 = scmp.ne.s32.totalorder %s90, %s91
    %p102 = scmp.eq.s32.totalorder %s14, 0
    %p103 = por %p101, %p102
    %p104 = scmp.ne.s32.totalorder %s90, %s91
    %p105 = scmp.eq.s32.totalorder %s15, 1
    %p106 = por %p104, %p105
    %p108 = scmp.ne.s32.totalorder %s91, %s107
    %p109 = scmp.eq.s32.totalorder %s15, 0
    %p110 = por %p108, %p109
    %p111 = scmp.le.s32.totalorder 1, %s9
    %p112 = scmp.lt.s32.totalorder %s9, 3
    %p113 = pnand %p111, %p112
    %p114 = pneg %p113
    // Predicated region
    $region9: #{se_block.1} parent=5 // pred_check
      _
    $region10: #{se_block.1} parent=5 // pred_check_branch
      %116 = sbr.rel (%p113) target = $region12
    $region11: #{se_block.1} parent=5 // pred_region
      %s117 = ssub.s32 %s9, 1
      // Predicated region
      $region13: #{se_block.1} parent=11 // pred_check
        %p118 = pneg %p56
      $region14: #{se_block.1} parent=11 // pred_check_branch
        %120 = sbr.rel (%p118) target = $region16
      $region15: #{se_block.1} parent=11 // pred_region
        _
      $region16: #{se_block.1} parent=11 // pred_fallthru
        _
      // Predicated region
      $region17: #{se_block.1} parent=11 // pred_check
        %p121 = pneg %p77
      $region18: #{se_block.1} parent=11 // pred_check_branch
        %123 = sbr.rel (%p121) target = $region20
      $region19: #{se_block.1} parent=11 // pred_region
        _
      $region20: #{se_block.1} parent=11 // pred_fallthru
        _
    $region12: #{se_block.1} parent=5 // pred_fallthru
      _
    %p124 = scmp.lt.s32.totalorder %s9, 2
    // Predicated region
    $region21: #{se_block.1} parent=5 // pred_check
      %p125 = pneg %p124
    $region22: #{se_block.1} parent=5 // pred_check_branch
      %127 = sbr.rel (%p125) target = $region24
    $region23: #{se_block.1} parent=5 // pred_region
      // Predicated region
      $region25: #{se_block.1} parent=23 // pred_check
        %p128 = pneg %p29
      $region26: #{se_block.1} parent=23 // pred_check_branch
        %130 = sbr.rel (%p128) target = $region28
      $region27: #{se_block.1} parent=23 // pred_region
        %p131 = scmp.lt.s32.totalorder %s9, 1
        %s132 = scalar_select %p131, %s9, 1
        %s133 = smul.addr %s132, 16
        %s134 = smul.addr %s133, 8
        %s135 = scalar_lea.vmem %s0, %s134
      $region28: #{se_block.1} parent=23 // pred_fallthru
        _
    $region24: #{se_block.1} parent=5 // pred_fallthru
      _
    %p136 = scmp.le.s32.totalorder 1, %s9
    %p137 = scmp.lt.s32.totalorder %s9, 3
    %p138 = pnand %p136, %p137
    %p139 = pneg %p138
    // Predicated region
    $region29: #{se_block.1} parent=5 // pred_check
      _
    $region30: #{se_block.1} parent=5 // pred_check_branch
      %141 = sbr.rel (%p138) target = $region32
    $region31: #{se_block.1} parent=5 // pred_region
      %s142 = ssub.s32 %s9, 1
      %p143 = scmp.lt.s32.totalorder %s14, 1
      %s144 = scalar_select %p143, %s14, 1
      %s145 = smul.addr %s144, 16
      %s146 = smul.addr %s145, 8
      %s147 = scalar_lea.vmem %s0, %s146
      %p148 = pneg %p35
      %p149 = pneg %p32
      %p150 = pneg %p56
      %p151 = pneg %p53
      %p152 = pneg %p77
      %p153 = pneg %p74
      %p154 = pneg %p103
      %p155 = pneg %p100
      %p156 = scmp.lt.s32.totalorder %s14, 1
      %s157 = scalar_select %p156, %s14, 1
      %s158 = smul.addr %s157, 16
      %s159 = smul.addr %s158, 8
      %s160 = scalar_lea.vmem %s3, %s159
      %p161 = scmp.lt.s32.totalorder %s14, 1
      %s162 = scalar_select %p161, %s14, 1
      %s163 = smul.addr %s162, 16
      %s164 = smul.addr %s163, 8
      %s165 = scalar_lea.vmem %s0, %s164
      %p166 = scmp.lt.s32.totalorder %s14, 1
      %s167 = scalar_select %p166, %s14, 1
      %s168 = smul.addr %s167, 16
      %s169 = smul.addr %s168, 8
      %s170 = scalar_lea.vmem %s3, %s169
      %v171 = vld [vmem:[%s165] sm:$0xff]
      %v172 = vld [vmem:[%s165 + $0x8] sm:$0xff]
      %v173 = vld [vmem:[%s165 + $0x10] sm:$0xff]
      %v174 = vld [vmem:[%s165 + $0x18] sm:$0xff]
      %v175 = vld [vmem:[%s165 + $0x20] sm:$0xff]
      %v176 = vld [vmem:[%s165 + $0x28] sm:$0xff]
      %v177 = vld [vmem:[%s165 + $0x30] sm:$0xff]
      %v178 = vld [vmem:[%s165 + $0x38] sm:$0xff]
      %v179 = vld [vmem:[%s165 + $0x40] sm:$0xff]
      %v180 = vld [vmem:[%s165 + $0x48] sm:$0xff]
      %v181 = vld [vmem:[%s165 + $0x50] sm:$0xff]
      %v182 = vld [vmem:[%s165 + $0x58] sm:$0xff]
      %v183 = vld [vmem:[%s165 + $0x60] sm:$0xff]
      %v184 = vld [vmem:[%s165 + $0x68] sm:$0xff]
      %v185 = vld [vmem:[%s165 + $0x70] sm:$0xff]
      %v186 = vld [vmem:[%s165 + $0x78] sm:$0xff]
      %v187 = vadd.f32 %v171, %v172
      %188 = vadd.xlane.f32.xlu0 %v187
      %v189 = vpop.xlane.xlu0 %188
      %v190 = vadd.f32 %v173, %v174
      %191 = vadd.xlane.f32.xlu0 %v190
      %v192 = vpop.xlane.xlu0 %191
      %v193 = vadd.f32 %v175, %v176
      %194 = vadd.xlane.f32.xlu0 %v193
      %v195 = vpop.xlane.xlu0 %194
      %v196 = vadd.f32 %v177, %v178
      %197 = vadd.xlane.f32.xlu0 %v196
      %v198 = vpop.xlane.xlu0 %197
      %v199 = vadd.f32 %v179, %v180
      %200 = vadd.xlane.f32.xlu0 %v199
      %v201 = vpop.xlane.xlu0 %200
      %v202 = vadd.f32 %v181, %v182
      %203 = vadd.xlane.f32.xlu0 %v202
      %v204 = vpop.xlane.xlu0 %203
      %v205 = vadd.f32 %v183, %v184
      %206 = vadd.xlane.f32.xlu0 %v205
      %v207 = vpop.xlane.xlu0 %206
      %v208 = vadd.f32 %v185, %v186
      %209 = vadd.xlane.f32.xlu0 %v208
      %v210 = vpop.xlane.xlu0 %209
      %v211 = vmul.f32 %v189, 0.00390625
      %v212 = vmul.f32 %v192, 0.00390625
      %v213 = vmul.f32 %v195, 0.00390625
      %v214 = vmul.f32 %v198, 0.00390625
      %v215 = vmul.f32 %v201, 0.00390625
      %v216 = vmul.f32 %v204, 0.00390625
      %v217 = vmul.f32 %v207, 0.00390625
      %v218 = vmul.f32 %v210, 0.00390625
      %v219 = vld [vmem:[%s1] sm:$0xff]
      %v220 = vld [vmem:[%s1 + $0x8] sm:$0xff]
      %v221 = vld [vmem:[%s1 + $0x10] sm:$0xff]
      %v222 = vld [vmem:[%s1 + $0x18] sm:$0xff]
      %v223 = vld [vmem:[%s1 + $0x20] sm:$0xff]
      %v224 = vld [vmem:[%s1 + $0x28] sm:$0xff]
      %v225 = vld [vmem:[%s1 + $0x30] sm:$0xff]
      %v226 = vld [vmem:[%s1 + $0x38] sm:$0xff]
      %v227 = vmul.f32 %v219, %v211
      %v228 = vmul.f32 %v220, %v212
      %v229 = vmul.f32 %v221, %v213
      %v230 = vmul.f32 %v222, %v214
      %v231 = vmul.f32 %v223, %v215
      %v232 = vmul.f32 %v224, %v216
      %v233 = vmul.f32 %v225, %v217
      %v234 = vmul.f32 %v226, %v218
      %vm235 = vcmask 31744
      %v236 = vsel %vm235, %v227, 0.0
      %v237 = vsel %vm235, %v228, 0.0
      %v238 = vadd.f32 %v236, %v237
      %v239 = vsel %vm235, %v229, 0.0
      %v240 = vadd.f32 %v238, %v239
      %v241 = vsel %vm235, %v230, 0.0
      %v242 = vadd.f32 %v240, %v241
      %v243 = vsel %vm235, %v231, 0.0
      %v244 = vadd.f32 %v242, %v243
      %v245 = vsel %vm235, %v232, 0.0
      %v246 = vadd.f32 %v244, %v245
      %v247 = vsel %vm235, %v233, 0.0
      %v248 = vadd.f32 %v246, %v247
      %v249 = vsel %vm235, %v234, 0.0
      %v250 = vadd.f32 %v248, %v249
      %v251 = vrot.slane %v250, 4
      %v252 = vadd.f32 %v250, %v251
      %v253 = vrot.slane %v252, 2
      %v254 = vadd.f32 %v252, %v253
      %v255 = vrot.slane %v254, 1
      %v256 = vadd.f32 %v254, %v255
      %v257 = vmax.f32 %v256, 0.0
      %v258 = vld [vmem:[%s2] sm:$0xff]
      %v259 = vld [vmem:[%s2 + $0x8] sm:$0xff]
      %v260 = vld [vmem:[%s2 + $0x10] sm:$0xff]
      %v261 = vld [vmem:[%s2 + $0x18] sm:$0xff]
      %v262 = vld [vmem:[%s2 + $0x20] sm:$0xff]
      %v263 = vld [vmem:[%s2 + $0x28] sm:$0xff]
      %v264 = vld [vmem:[%s2 + $0x30] sm:$0xff]
      %v265 = vld [vmem:[%s2 + $0x38] sm:$0xff]
      %v266 = vmul.f32 %v258, %v257
      %v267 = vmul.f32 %v259, %v257
      %v268 = vmul.f32 %v260, %v257
      %v269 = vmul.f32 %v261, %v257
      %v270 = vmul.f32 %v262, %v257
      %v271 = vmul.f32 %v263, %v257
      %v272 = vmul.f32 %v264, %v257
      %v273 = vmul.f32 %v265, %v257
      %v274 = vsel %vm235, %v266, 0.0
      %275 = vadd.xlane.f32.xlu0 %v274
      %v276 = vpop.xlane.xlu0 %275
      %v277 = vsel %vm235, %v267, 0.0
      %278 = vadd.xlane.f32.xlu0 %v277
      %v279 = vpop.xlane.xlu0 %278
      %v280 = vsel %vm235, %v268, 0.0
      %281 = vadd.xlane.f32.xlu0 %v280
      %v282 = vpop.xlane.xlu0 %281
      %v283 = vsel %vm235, %v269, 0.0
      %284 = vadd.xlane.f32.xlu0 %v283
      %v285 = vpop.xlane.xlu0 %284
      %v286 = vsel %vm235, %v270, 0.0
      %287 = vadd.xlane.f32.xlu0 %v286
      %v288 = vpop.xlane.xlu0 %287
      %v289 = vsel %vm235, %v271, 0.0
      %290 = vadd.xlane.f32.xlu0 %v289
      %v291 = vpop.xlane.xlu0 %290
      %v292 = vsel %vm235, %v272, 0.0
      %293 = vadd.xlane.f32.xlu0 %v292
      %v294 = vpop.xlane.xlu0 %293
      %v295 = vsel %vm235, %v273, 0.0
      %296 = vadd.xlane.f32.xlu0 %v295
      %v297 = vpop.xlane.xlu0 %296
      %v298 = vsub.f32 0.0, %v276
      %v299 = vsub.f32 0.0, %v279
      %v300 = vsub.f32 0.0, %v282
      %v301 = vsub.f32 0.0, %v285
      %v302 = vsub.f32 0.0, %v288
      %v303 = vsub.f32 0.0, %v291
      %v304 = vsub.f32 0.0, %v294
      %v305 = vsub.f32 0.0, %v297
      %v306 = vmul.f32 %v298, 1.442695
      %v307 = vpow.pop %v306
      %v308 = vmul.f32 %v299, 1.442695
      %v309 = vpow.pop %v308
      %v310 = vmul.f32 %v300, 1.442695
      %v311 = vpow.pop %v310
      %v312 = vmul.f32 %v301, 1.442695
      %v313 = vpow.pop %v312
      %v314 = vmul.f32 %v302, 1.442695
      %v315 = vpow.pop %v314
      %v316 = vmul.f32 %v303, 1.442695
      %v317 = vpow.pop %v316
      %v318 = vmul.f32 %v304, 1.442695
      %v319 = vpow.pop %v318
      %v320 = vmul.f32 %v305, 1.442695
      %v321 = vpow.pop %v320
      %v322 = vadd.f32 %v307, 1.0
      %v323 = vadd.f32 %v309, 1.0
      %v324 = vadd.f32 %v311, 1.0
      %v325 = vadd.f32 %v313, 1.0
      %v326 = vadd.f32 %v315, 1.0
      %v327 = vadd.f32 %v317, 1.0
      %v328 = vadd.f32 %v319, 1.0
      %v329 = vadd.f32 %v321, 1.0
      %v330 = vrcp.pop %v322
      %v331 = vmul.f32 1.0, %v330
      %v332 = vrcp.pop %v323
      %v333 = vmul.f32 1.0, %v332
      %v334 = vrcp.pop %v324
      %v335 = vmul.f32 1.0, %v334
      %v336 = vrcp.pop %v325
      %v337 = vmul.f32 1.0, %v336
      %v338 = vrcp.pop %v326
      %v339 = vmul.f32 1.0, %v338
      %v340 = vrcp.pop %v327
      %v341 = vmul.f32 1.0, %v340
      %v342 = vrcp.pop %v328
      %v343 = vmul.f32 1.0, %v342
      %v344 = vrcp.pop %v329
      %v345 = vmul.f32 1.0, %v344
      %v346 = vmul.f32 %v171, %v331
      %v347 = vmul.f32 %v172, %v331
      %v348 = vmul.f32 %v173, %v333
      %v349 = vmul.f32 %v174, %v333
      %v350 = vmul.f32 %v175, %v335
      %v351 = vmul.f32 %v176, %v335
      %v352 = vmul.f32 %v177, %v337
      %v353 = vmul.f32 %v178, %v337
      %v354 = vmul.f32 %v179, %v339
      %v355 = vmul.f32 %v180, %v339
      %v356 = vmul.f32 %v181, %v341
      %v357 = vmul.f32 %v182, %v341
      %v358 = vmul.f32 %v183, %v343
      %v359 = vmul.f32 %v184, %v343
      %v360 = vmul.f32 %v185, %v345
      %v361 = vmul.f32 %v186, %v345
      %362 = vst [vmem:[%s170] sm:$0xff] %v346
      %363 = vst [vmem:[%s170 + $0x8] sm:$0xff] %v347
      %364 = vst [vmem:[%s170 + $0x10] sm:$0xff] %v348
      %365 = vst [vmem:[%s170 + $0x18] sm:$0xff] %v349
      %366 = vst [vmem:[%s170 + $0x20] sm:$0xff] %v350
      %367 = vst [vmem:[%s170 + $0x28] sm:$0xff] %v351
      %368 = vst [vmem:[%s170 + $0x30] sm:$0xff] %v352
      %369 = vst [vmem:[%s170 + $0x38] sm:$0xff] %v353
      %370 = vst [vmem:[%s170 + $0x40] sm:$0xff] %v354
      %371 = vst [vmem:[%s170 + $0x48] sm:$0xff] %v355
      %372 = vst [vmem:[%s170 + $0x50] sm:$0xff] %v356
      %373 = vst [vmem:[%s170 + $0x58] sm:$0xff] %v357
      %374 = vst [vmem:[%s170 + $0x60] sm:$0xff] %v358
      %375 = vst [vmem:[%s170 + $0x68] sm:$0xff] %v359
      %376 = vst [vmem:[%s170 + $0x70] sm:$0xff] %v360
      %377 = vst [vmem:[%s170 + $0x78] sm:$0xff] %v361
      %p378 = scmp.lt.s32.totalorder %s14, 1
      %s379 = scalar_select %p378, %s14, 1
      %s380 = smul.addr %s379, 16
      %s381 = smul.addr %s380, 8
      %s382 = scalar_lea.vmem %s3, %s381
      // Predicated region
      $region33: #{se_block.1} parent=31 // pred_check
        %p383 = pneg %p100
      $region34: #{se_block.1} parent=31 // pred_check_branch
        %385 = sbr.rel (%p383) target = $region36
      $region35: #{se_block.1} parent=31 // pred_region
        _
      $region36: #{se_block.1} parent=31 // pred_fallthru
        _
    $region32: #{se_block.1} parent=5 // pred_fallthru
      _
    %p386 = scmp.le.s32.totalorder 2, %s9
    // Predicated region
    $region37: #{se_block.1} parent=5 // pred_check
      %p387 = pneg %p386
    $region38: #{se_block.1} parent=5 // pred_check_branch
      %389 = sbr.rel (%p387) target = $region40
    $region39: #{se_block.1} parent=5 // pred_region
      %s390 = ssub.s32 %s9, 2
      // Predicated region
      $region41: #{se_block.1} parent=39 // pred_check
        %p391 = pneg %p106
      $region42: #{se_block.1} parent=39 // pred_check_branch
        %393 = sbr.rel (%p391) target = $region44
      $region43: #{se_block.1} parent=39 // pred_region
        %p394 = scmp.lt.s32.totalorder %s15, 1
        %s395 = scalar_select %p394, %s15, 1
        %s396 = smul.addr %s395, 16
        %s397 = smul.addr %s396, 8
        %s398 = scalar_lea.vmem %s3, %s397
      $region44: #{se_block.1} parent=39 // pred_fallthru
        _
    $region40: #{se_block.1} parent=5 // pred_fallthru
      _
  $region6: #{se_block.1} parent=0 // loop_footer
    %s13 = sadd.s32 1, %s9
  $region7: #{se_block.1} parent=0 // loop_footer_branch
    %8 = sbr.rel target = $region3
  $region8: #{se_block.1} parent=0 // loop_exit
    _

</llo_original>
